<compile_context>
chip_gen: v6e
topology: v6e:2x2x1
jax: 0.10.0
libtpu: 0.0.40
codegen_flags: <defaults>
</compile_context>

<pallas_src>
import jax
import jax.numpy as jnp
from jax.experimental import pallas as pl
from jax.experimental.pallas import tpu as pltpu


_LANES = 128
_DEFAULT_BLOCK_ROWS = 4096             # f32 rows -> 2 MiB per input buffer
_DEFAULT_NUM_PARTIALS = 1              # 1 for v5e/v6e; 2 (+core_parallel) on v7x
_DEFAULT_MIN_PALLAS_ELEMS = 2 * 1024 * 1024  # below this, XLA's fused sum wins


# ----------------------------------------------------------------------------
# Abstract layer: exact semantics of the PyTorch module.
# ----------------------------------------------------------------------------
class _AbstractPriorLayer:
    """Abstract layer for definition of priors (JAX port).

    Only imposes the minimal functional constraints to enable model
    estimation and inference, identical to the PyTorch reference.
    """

    def __init__(self):
        self.callback_indices = slice(None, None)

    def forward(self, x):
        # Exact semantics of the reference module: forward must be overridden.
        raise NotImplementedError(
            "forward() method must be overridden in custom classes inheriting "
            "from _AbstractPriorLayer()"
        )

    def __call__(self, x):
        return self.forward(x)


# ----------------------------------------------------------------------------
# Pallas kernel: tiled scalar energy reduction with an (8, 128) accumulator.
# ----------------------------------------------------------------------------
def _make_energy_kernel(sub_blocks):
    def kernel(x_ref, o_ref, acc_ref):
        j = pl.program_id(1)   # reduction axis ("arbitrary")

        @pl.when(j == 0)
        def _init():
            acc_ref[...] = jnp.zeros_like(acc_ref)

        # Native-dtype tile is DMA'd in; cast + tree-reduce to (8, 128) on the
        # VPU, then accumulate into the single resident vreg-sized tile.
        tile = x_ref[...].astype(jnp.float32)
        if sub_blocks > 1:
            tile = tile.reshape(sub_blocks, 8, _LANES).sum(axis=0)
        acc_ref[...] += tile

        # One cross-lane/sublane reduce (1K elements) + SMEM scalar store,
        # only on the last reduction step.
        @pl.when(j == pl.num_programs(1) - 1)
        def _finalize():
            o_ref[0, 0] = jnp.sum(acc_ref[...])

    return kernel


def _pallas_prior_energy_sum(x,
                             *,
                             block_rows=_DEFAULT_BLOCK_ROWS,
                             num_partials=_DEFAULT_NUM_PARTIALS,
                             min_pallas_elems=_DEFAULT_MIN_PALLAS_ELEMS,
                             core_parallel=False,
                             input_buffers=2):
    """Compute sum(x) as a scalar f32 with a tiled Pallas TPU reduction."""
    flat = x.reshape(-1)                   # native dtype; no cast, no pad
    n = flat.shape[0]
    if n == 0:
        return jnp.zeros((), jnp.float32)
    if (n % _LANES != 0) or (n < min_pallas_elems):
        # TODO(synk): element counts not divisible by 128 fall back to XLA's
        # fused reduction instead of an in-kernel sub-lane tail mask.
        return jnp.sum(flat.astype(jnp.float32))

    total_rows = n // _LANES
    mat = flat.reshape(total_rows, _LANES)     # layout-compatible reshape

    # Round block_rows to the dtype's sublane tile; scale rows by packing so
    # bytes/step stay constant across dtypes (f32 -> x1, bf16 -> x2, int8 -> x4).
    itemsize = max(1, jnp.dtype(x.dtype).itemsize)
    packing = max(1, 4 // itemsize)
    sublane = 8 * packing
    eff_block_rows = max(sublane, (int(block_rows) * packing // sublane) * sublane)

    if total_rows < eff_block_rows:
        if total_rows % 8 != 0:
            # Tiny irregular input: XLA handles it (kernel path needs rows%8==0
            # for the in-kernel tree reduce).
            return jnp.sum(flat.astype(jnp.float32))
        eff_block_rows = total_rows            # single full-extent block

    num_blocks = total_rows // eff_block_rows
    main_rows = num_blocks * eff_block_rows

    # Peel the ragged tail into a tiny XLA sum -> no in-kernel masking at all.
    if main_rows < total_rows:
        tail_energy = jnp.sum(mat[main_rows:].astype(jnp.float32))
        mat_main = mat[:main_rows]
    else:
        tail_energy = jnp.zeros((), jnp.float32)
        mat_main = mat

    # Partition split only when it divides evenly (no phantom blocks).
    num_partials = max(1, int(num_partials))
    if num_partials > 1 and num_blocks % num_partials != 0:
        num_partials = 1
    blocks_per_part = num_blocks // num_partials
    assert num_partials * blocks_per_part == num_blocks

    sub_blocks = eff_block_rows // 8
    kernel = _make_energy_kernel(sub_blocks)

    def x_index_map(c, j):
        return (c * blocks_per_part + j, 0)

    in_spec_kwargs = {}
    if input_buffers and int(input_buffers) > 2:
        in_spec_kwargs["pipeline_mode"] = pl.Buffered(int(input_buffers))
    in_spec = pl.BlockSpec((eff_block_rows, _LANES), x_index_map,
                           **in_spec_kwargs)

    # Only CORE_PARALLEL actually shards across v7x's 2 TensorCores; plain
    # "parallel" is effectively a serial loop on 1-TC chips (and harmless).
    lead_sem = pltpu.CORE_PARALLEL if (core_parallel and num_partials > 1) \
        else "parallel"

    partials = pl.pallas_call(
        kernel,
        out_shape=jax.ShapeDtypeStruct((num_partials, 1), jnp.float32),
        grid_spec=pltpu.PrefetchScalarGridSpec(
            num_scalar_prefetch=0,
            grid=(num_partials, blocks_per_part),
            in_specs=[in_spec],
            out_specs=pl.BlockSpec((1, 1), lambda c, j: (c, 0),
                                   memory_space=pltpu.SMEM),
            scratch_shapes=[pltpu.VMEM((8, _LANES), jnp.float32)],
        ),
        compiler_params=pltpu.CompilerParams(
            dimension_semantics=(lead_sem, "arbitrary"),
            vmem_limit_bytes=32 * 1024 * 1024,   # room for big tiles; <64 MiB v7x
        ),
    )(mat_main)

    return jnp.sum(partials) + tail_energy


class _SumEnergyPrior(_AbstractPriorLayer):
    """Minimal concrete prior: energy = sum over callback_indices of x.

    The abstract class itself carries no computation; this subclass only
    demonstrates the abstract contract with a Pallas-backed reduction.
    """

    def __init__(self,
                 block_rows=_DEFAULT_BLOCK_ROWS,
                 num_partials=_DEFAULT_NUM_PARTIALS,
                 min_pallas_elems=_DEFAULT_MIN_PALLAS_ELEMS,
                 core_parallel=False):
        super().__init__()
        self.block_rows = block_rows
        self.num_partials = num_partials
        self.min_pallas_elems = min_pallas_elems
        self.core_parallel = core_parallel

    def forward(self, x):
        # callback_indices == slice(None, None) -> selects the full batch axis.
        x_sel = x[self.callback_indices]
        return _pallas_prior_energy_sum(
            x_sel,
            block_rows=self.block_rows,
            num_partials=self.num_partials,
            min_pallas_elems=self.min_pallas_elems,
            core_parallel=self.core_parallel,
        )


if __name__ == "__main__":
    key = jax.random.PRNGKey(0)
    # Small NCHW input consistent with a conv-style network input.
    x = jax.random.normal(key, (2, 4, 16, 16), dtype=jnp.float32)

    # 1) Exact abstract-class semantics: forward raises NotImplementedError.
    abstract_layer = _AbstractPriorLayer()
    assert abstract_layer.callback_indices == slice(None, None)
    try:
        abstract_layer(x)
        raise AssertionError("abstract forward() should have raised")
    except NotImplementedError:
        pass

    # 2) Run the Pallas reduction kernel via the concrete demo subclass
    #    (min_pallas_elems=0 forces the Pallas path for this small input;
    #    single full-extent block, tree-reduce to the (8,128) accumulator).
    prior = _SumEnergyPrior(min_pallas_elems=0)
    energy = jax.block_until_ready(prior(x))
    ref = jnp.sum(x.astype(jnp.float32))
    assert jnp.allclose(energy, ref, rtol=1e-5, atol=1e-4), (energy, ref)

    # 3) Multi-block grid + wrapper-side tail peel + native bf16 DMA path.
    k1, k2 = jax.random.split(jax.random.PRNGKey(1))
    y = jax.random.normal(k1, (2, 3, 20, 128), dtype=jnp.float32)
    y = y.astype(jnp.bfloat16)
    e2 = jax.block_until_ready(
        _pallas_prior_energy_sum(y, block_rows=16, min_pallas_elems=0))
    ref2 = jnp.sum(y.astype(jnp.float32))
    assert jnp.allclose(e2, ref2, rtol=1e-3, atol=1e-1), (e2, ref2)

    # 4) Two-partition path (evenly split, no phantom blocks), f32, multi-step.
    z = jax.random.normal(k2, (4, 4, 8, 128), dtype=jnp.float32)
    e3 = jax.block_until_ready(
        _pallas_prior_energy_sum(z, block_rows=32, num_partials=2,
                                 min_pallas_elems=0))
    ref3 = jnp.sum(z)
    assert jnp.allclose(e3, ref3, rtol=1e-5, atol=1e-3), (e3, ref3)

    print("KERNEL_OK")
</pallas_src>

<mosaic_0001>
module attributes {stable_mosaic.version = 11 : i64} {
  func.func @kernel(%arg0: i32, %arg1: i32, %arg2: memref<16x128xf32, #tpu.memory_space<vmem>>, %arg3: memref<1x1xf32, #tpu.memory_space<smem>>, %arg4: memref<8x128xf32, #tpu.memory_space<vmem>>) attributes {dimension_semantics = [#tpu.dimension_semantics<parallel>, #tpu.dimension_semantics<arbitrary>], iteration_bounds = array<i64: 1, 1>, scalar_prefetch = 0 : i64, scratch_operands = 1 : i64, tpu.core_type = #tpu.core_type<tc>, window_params = [{transform_indices = @transform_0, window_bounds = array<i64: 16, 128>}, {transform_indices = @transform_1, window_bounds = array<i64: 1, 1>}]} {
    %c0_i32 = arith.constant 0 : i32
    %0 = arith.cmpi eq, %arg1, %c0_i32 : i32
    %1 = arith.extui %0 : i1 to i32
    %c0_i32_0 = arith.constant 0 : i32
    %2 = arith.cmpi ne, %1, %c0_i32_0 : i32
    scf.if %2 {
      %cst_8 = arith.constant 0.000000e+00 : f32
      %12 = vector.broadcast %cst_8 : f32 to vector<8x128xf32>
      %c0_9 = arith.constant 0 : index
      %c0_10 = arith.constant 0 : index
      %13 = vector.load %arg4[%c0_9, %c0_10] : memref<8x128xf32, #tpu.memory_space<vmem>>, vector<8x128xf32>
      tpu.vector_store %arg4[%c0_9, %c0_10], %12 {strides = array<i32>} : memref<8x128xf32, #tpu.memory_space<vmem>>, vector<8x128xf32>,
    } else {
    }
    %c0 = arith.constant 0 : index
    %c0_1 = arith.constant 0 : index
    %3 = vector.load %arg2[%c0, %c0_1] : memref<16x128xf32, #tpu.memory_space<vmem>>, vector<16x128xf32>
    %4 = vector.shape_cast %3 : vector<16x128xf32> to vector<2x8x128xf32>
    %cst = arith.constant dense<0.000000e+00> : vector<8x128xf32>
    %5 = vector.multi_reduction <add>, %4, %cst [0] : vector<2x8x128xf32> to vector<8x128xf32>
    %c0_2 = arith.constant 0 : index
    %c0_3 = arith.constant 0 : index
    %6 = vector.load %arg4[%c0_2, %c0_3] : memref<8x128xf32, #tpu.memory_space<vmem>>, vector<8x128xf32>
    %7 = arith.addf %6, %5 : vector<8x128xf32>
    %c0_4 = arith.constant 0 : index
    %c0_5 = arith.constant 0 : index
    %8 = vector.load %arg4[%c0_4, %c0_5] : memref<8x128xf32, #tpu.memory_space<vmem>>, vector<8x128xf32>
    tpu.vector_store %arg4[%c0_4, %c0_5], %7 {strides = array<i32>} : memref<8x128xf32, #tpu.memory_space<vmem>>, vector<8x128xf32>,
    %c0_i32_6 = arith.constant 0 : i32
    %9 = arith.cmpi eq, %arg1, %c0_i32_6 : i32
    %10 = arith.extui %9 : i1 to i32
    %c0_i32_7 = arith.constant 0 : i32
    %11 = arith.cmpi ne, %10, %c0_i32_7 : i32
    scf.if %11 {
      %c0_8 = arith.constant 0 : index
      %c0_9 = arith.constant 0 : index
      %12 = vector.load %arg4[%c0_8, %c0_9] : memref<8x128xf32, #tpu.memory_space<vmem>>, vector<8x128xf32>
      %13 = vector.shape_cast %12 : vector<8x128xf32> to vector<1x8x128xf32>
      %cst_10 = arith.constant dense<0.000000e+00> : vector<1xf32>
      %14 = vector.multi_reduction <add>, %13, %cst_10 [1, 2] : vector<1x8x128xf32> to vector<1xf32>
      %15 = vector.shape_cast %14 : vector<1xf32> to vector<1x1x1xf32>
      %16 = vector.extract %15[0, 0, 0] : f32 from vector<1x1x1xf32>
      %c0_11 = arith.constant 0 : index
      %c0_12 = arith.constant 0 : index
      %17 = memref.load %arg3[%c0_11, %c0_12] : memref<1x1xf32, #tpu.memory_space<smem>>
      memref.store %16, %arg3[%c0_11, %c0_12] : memref<1x1xf32, #tpu.memory_space<smem>>
    } else {
    }
    return
  }
  func.func @transform_0(%arg0: i32, %arg1: i32) -> (i32, i32) {
    %c1_i32 = arith.constant 1 : i32
    %0 = arith.muli %arg0, %c1_i32 : i32
    %1 = arith.addi %0, %arg1 : i32
    %c0_i32 = arith.constant 0 : i32
    %c0_i32_0 = arith.constant 0 : i32
    return %1, %c0_i32 : i32, i32
  }
  func.func @transform_1(%arg0: i32, %arg1: i32) -> (i32, i32) {
    %c0_i32 = arith.constant 0 : i32
    %c0_i32_0 = arith.constant 0 : i32
    return %arg0, %c0_i32 : i32, i32
  }
}

</mosaic_0001>

<llo_original>
// kernel: tpu_custom_call.1
$region0: #{tpu_custom_call.1}
  #allocation0 [shape = 'u32[]', space=smem, size = 0x4, offset = 0x4, fixed_abs, tag = 'smem constant byte address 0x4 - core index']
  #allocation1 [shape = 'u32[144,128]{1,0:T(1,128)}', space=vmem, size = 0x12000, scoped, tag = 'internal scratch']
  #allocation2 [shape = 'f32[8,128]{1,0:T(8,128)}', space=vmem, size = 0x1000, scoped, tag = 'scratch operand']
  %s0 = inlined_call_operand.hbm [shape: f32[16,128], index: 0, kind: input, shape index: {}]
  %s1 = inlined_call_operand.hbm [shape: f32[1,1], index: 1, kind: output, shape index: {}]
  %s2 = sld [smem:[#allocation0]]
  $region26: #{tpu_custom_call.1} parent=0
    _
  %s4 = ssub.s32 1, %s2
  %s5 = scalar_select 0, %s4, %s2
  $region1: #{tpu_custom_call.1} parent=0
    #allocation3 [shape = 'u8[8192]{0}', space=vmem, size = 0x2000, scoped, tag = 'input window, operand 0, single buffered']
    #allocation4 [shape = 's32[1]{0}', space=sflag, size = 0x4, scoped, tag = 'scoped memory for tpu_custom_call.1']
    #allocation5 [shape = 's32[1]{0}', space=sflag, size = 0x4, scoped, tag = 'scoped memory for tpu_custom_call.1']
    #allocation6 [shape = 'u8[512]{0}', space=smem, size = 0x200, scoped, tag = 'output window, operand 0, single buffered']
    %6 = vsyncpa [#allocation4], 0
    %7 = vsyncpa [#allocation5], 0
    // Predicated region
    $region2: #{tpu_custom_call.1} parent=1 // pred_check
      _
    $region3: #{tpu_custom_call.1} parent=1 // pred_check_branch
      %9 = sbr.rel (0) target = $region5
    $region4: #{tpu_custom_call.1} parent=1 // pred_region
      %s10 = sadd.s32 0, 0
      %s11 = smul.u32 2, %s10
      %s13 = ssub.s32 256, 256
      %14 = vsyncadd [#allocation4], %s13
      %s15 = smul.addr %s11, 128
      %s16 = scalar_lea.hbm %s0, %s15
      %s17 = sshll.u32 [#allocation3], 4
      %s18 = int_to_ptr.vmem [resolvable:$true] %s17
      %23 = dma.hbm_to_vmem [thread:$0]  %s16, 256, %s18, [#allocation4], 128, 128, 8
    $region5: #{tpu_custom_call.1} parent=1 // pred_fallthru
      _
    // Predicated region
    $region6: #{tpu_custom_call.1} parent=1 // pred_check
      _
    $region7: #{tpu_custom_call.1} parent=1 // pred_check_branch
      %25 = sbr.rel (0) target = $region9
    $region8: #{tpu_custom_call.1} parent=1 // pred_region
      %26 = dma.done [#allocation4], 256
    $region9: #{tpu_custom_call.1} parent=1 // pred_fallthru
      _
    %s27 = sadd.s32 0, 0
    %s28 = smul.u32 2, %s27
    %p29 = scmp.eq.s32.totalorder 0, 0
    // Predicated region
    $region10: #{tpu_custom_call.1} parent=1 // pred_check
      %p30 = pneg %p29
    $region11: #{tpu_custom_call.1} parent=1 // pred_check_branch
      %32 = sbr.rel (%p30) target = $region13
    $region12: #{tpu_custom_call.1} parent=1 // pred_region
      %33 = vst [vmem:[#allocation2] sm:$0xff] 0.0
    $region13: #{tpu_custom_call.1} parent=1 // pred_fallthru
      _
    %v34 = vld [vmem:[#allocation3] sm:$0xff]
    %v35 = vld [vmem:[#allocation3 + $0x8] sm:$0xff]
    %v36 = vadd.f32 %v34, %v35
    %v37 = vld [vmem:[#allocation2] sm:$0xff]
    %v38 = vadd.f32 %v37, %v36
    %39 = vst [vmem:[#allocation2] sm:$0xff] %v38
    // Predicated region
    $region14: #{tpu_custom_call.1} parent=1 // pred_check
      %p40 = pneg %p29
    $region15: #{tpu_custom_call.1} parent=1 // pred_check_branch
      %42 = sbr.rel (%p40) target = $region17
    $region16: #{tpu_custom_call.1} parent=1 // pred_region
      %v43 = vld [vmem:[#allocation2] sm:$0xff]
      %44 = vadd.xlane.f32.xlu0 %v43
      %v45 = vpop.xlane.xlu0 %44
      %v46 = vrot.slane %v45, 4
      %v47 = vadd.f32 %v45, %v46
      %v48 = vrot.slane %v47, 2
      %v49 = vadd.f32 %v47, %v48
      %v50 = vrot.slane %v49, 1
      %v51 = vadd.f32 %v49, %v50
      %s52 = vtos %v51
      %s53 = scalar_lea.smem [#allocation6], 0
      %54 = sst [smem:[%s53]] %s52
    $region17: #{tpu_custom_call.1} parent=1 // pred_fallthru
      _
    // Predicated region
    $region18: #{tpu_custom_call.1} parent=1 // pred_check
      _
    $region19: #{tpu_custom_call.1} parent=1 // pred_check_branch
      %56 = sbr.rel (0) target = $region21
    $region20: #{tpu_custom_call.1} parent=1 // pred_region
      %s58 = ssub.s32 16, 16
      %59 = vsyncadd [#allocation5], %s58
      %62 = dma.smem_to_hbm [#allocation6], 16, %s1, [#allocation5]
    $region21: #{tpu_custom_call.1} parent=1 // pred_fallthru
      _
    // Predicated region
    $region22: #{tpu_custom_call.1} parent=1 // pred_check
      _
    $region23: #{tpu_custom_call.1} parent=1 // pred_check_branch
      %64 = sbr.rel (0) target = $region25
    $region24: #{tpu_custom_call.1} parent=1 // pred_region
      %65 = dma.done [#allocation5], 16
    $region25: #{tpu_custom_call.1} parent=1 // pred_fallthru
      _
    %66 = sfence
    %67 = vsyncpa [#allocation4], 1
    %68 = vsyncpa [#allocation5], 1

</llo_original>
